<compile_context>
chip_gen: v6e
topology: v6e:2x2x1
jax: 0.10.0
libtpu: 0.0.40
codegen_flags: <defaults>
</compile_context>

<pallas_src>
import jax
import jax.numpy as jnp
from jax import lax
from jax.experimental import pallas as pl
from jax.experimental.pallas import tpu as pltpu


def _round_up(x, m):
    return (x + m - 1) // m * m


def _make_kernel(*, n, block, inv_temp, mm_dtype, mask_cols, mask_rows):
    def kernel(q_ref, k_ref, o_ref, s_ref):
        qi = pl.program_id(0)
        ki = pl.program_id(1)
        nk = pl.num_programs(1)

        @pl.when(ki == 0)
        def _():
            s_ref[...] = jnp.zeros_like(s_ref)

        # --- per-tile L2 normalization (f32, rsqrt-multiply) ------------------
        q = q_ref[...].astype(jnp.float32)
        qn = q * lax.rsqrt(jnp.maximum(jnp.sum(q * q, axis=1, keepdims=True), 1e-24))
        k = k_ref[...].astype(jnp.float32)
        kn = k * lax.rsqrt(jnp.maximum(jnp.sum(k * k, axis=1, keepdims=True), 1e-24))

        # Per-row shift == target logit == logits[i, i] == inv_temp * ||qn_i||^2.
        # It upper-bounds the row (unit-norm rows), so it doubles as the
        # logsumexp shift: no row-max reduce, no diagonal mask needed.
        shift = inv_temp * jnp.sum(qn * qn, axis=1, keepdims=True)        # (T, 1)

        # Similarity tile on the MXU; contract over D on both operands so no
        # transpose of the k tile is materialized.
        logits = lax.dot_general(
            qn.astype(mm_dtype), kn.astype(mm_dtype),
            dimension_numbers=(((1,), (1,)), ((), ())),
            preferred_element_type=jnp.float32) * inv_temp               # (T, T)

        p = jnp.exp(logits - shift)
        if mask_cols:  # drop contributions of zero-padded k rows
            col = ki * block + lax.broadcasted_iota(jnp.int32, (1, block), 1)
            p = jnp.where(col < n, p, 0.0)
        s_ref[...] += jnp.sum(p, axis=1, keepdims=True)                   # online sum

        @pl.when(ki == nk - 1)
        def _():
            loss_rows = jnp.log(s_ref[...])                               # (T, 1)
            if mask_rows:  # drop zero-padded q rows
                row = qi * block + lax.broadcasted_iota(jnp.int32, (block, 1), 0)
                loss_rows = jnp.where(row < n, loss_rows, 0.0)
            partial = jnp.sum(loss_rows, axis=0, keepdims=True)           # (1, 1)
            # lane-dense (1, 128) store of this q-block's partial loss sum
            o_ref[...] = jnp.broadcast_to(partial, (1, 128)).astype(jnp.float32)

    return kernel


def contrastive_loss(features: jax.Array, temperature: float = 0.05,
                     block: int = 256) -> jax.Array:
    """Pallas TPU implementation of ContrastiveLoss.forward (reduction='sum')."""
    n, d = features.shape
    t = min(int(block), _round_up(n, 128))   # q/k tile size (multiple of 128)
    n_pad = _round_up(n, t)
    num_q = n_pad // t
    num_k = n_pad // t

    x = features
    if n_pad != n:
        x = jnp.pad(x, ((0, n_pad - n), (0, 0)))

    # bf16 inputs: normalize in f32 but feed the MXU in bf16 (f32 accumulate).
    mm_dtype = jnp.bfloat16 if features.dtype == jnp.bfloat16 else jnp.float32
    kernel = _make_kernel(n=n, block=t, inv_temp=1.0 / float(temperature),
                          mm_dtype=mm_dtype,
                          mask_cols=(n_pad != n), mask_rows=(n_pad != n))

    out = pl.pallas_call(
        kernel,
        out_shape=jax.ShapeDtypeStruct((1, num_q * 128), jnp.float32),
        grid_spec=pltpu.PrefetchScalarGridSpec(
            num_scalar_prefetch=0,
            grid=(num_q, num_k),                                 # k innermost
            in_specs=[
                pl.BlockSpec((t, d), lambda qi, ki: (qi, 0)),    # q tile (resident over k)
                pl.BlockSpec((t, d), lambda qi, ki: (ki, 0)),    # k tile (double-buffered)
            ],
            out_specs=pl.BlockSpec((1, 128), lambda qi, ki: (0, qi)),
            scratch_shapes=[pltpu.VMEM((t, 1), jnp.float32)],    # running sum(exp) per q row
        ),
        compiler_params=pltpu.CompilerParams(
            dimension_semantics=("parallel", "arbitrary")),
    )(x, x)

    # Final tiny reduction over per-q-block partials (lane 0 of each 128-lane block).
    return jnp.sum(out.reshape(num_q, 128)[:, 0])


def _reference_loss(features, temperature=0.05):
    # Pure-JAX reference mirroring the PyTorch module.
    x = features.astype(jnp.float32)
    norm = jnp.maximum(jnp.linalg.norm(x, axis=1, keepdims=True), 1e-12)
    xn = x / norm
    logits = jnp.matmul(xn, xn.T, precision=jax.lax.Precision.HIGHEST) / temperature
    lse = jax.scipy.special.logsumexp(logits, axis=1)
    diag = jnp.diag(logits)
    return jnp.sum(lse - diag)


if __name__ == "__main__":
    key = jax.random.PRNGKey(0)

    # Small shape implied by the module: a batch of N feature vectors of dim D.
    N, D = 8, 32
    features = jax.random.normal(key, (N, D), dtype=jnp.float32)
    loss = jax.block_until_ready(contrastive_loss(features, temperature=0.05))
    ref = _reference_loss(features, temperature=0.05)
    assert jnp.allclose(loss, ref, rtol=1e-3, atol=1e-3), (loss, ref)

    # Multi-tile path: padding (200 -> 256) + 2x2 grid with online accumulation over k.
    key2 = jax.random.PRNGKey(1)
    N2, D2 = 200, 64
    feats2 = jax.random.normal(key2, (N2, D2), dtype=jnp.float32)
    loss2 = jax.block_until_ready(contrastive_loss(feats2, temperature=0.05, block=128))
    ref2 = _reference_loss(feats2, temperature=0.05)
    assert jnp.allclose(loss2, ref2, rtol=1e-2, atol=5e-3), (loss2, ref2)

    print("KERNEL_OK")
</pallas_src>

<mosaic_0001>
module attributes {stable_mosaic.version = 11 : i64} {
  func.func @kernel(%arg0: i32, %arg1: i32, %arg2: memref<128x32xf32, #tpu.memory_space<vmem>>, %arg3: memref<128x32xf32, #tpu.memory_space<vmem>>, %arg4: memref<1x128xf32, #tpu.memory_space<vmem>>, %arg5: memref<128x1xf32, #tpu.memory_space<vmem>>) attributes {dimension_semantics = [#tpu.dimension_semantics<parallel>, #tpu.dimension_semantics<arbitrary>], iteration_bounds = array<i64: 1, 1>, scalar_prefetch = 0 : i64, scratch_operands = 1 : i64, tpu.core_type = #tpu.core_type<tc>, window_params = [{transform_indices = @transform_0, window_bounds = array<i64: 128, 32>}, {transform_indices = @transform_1, window_bounds = array<i64: 128, 32>}, {transform_indices = @transform_2, window_bounds = array<i64: 1, 128>}]} {
    %c0_i32 = arith.constant 0 : i32
    %0 = arith.cmpi eq, %arg1, %c0_i32 : i32
    %1 = arith.extui %0 : i1 to i32
    %c0_i32_0 = arith.constant 0 : i32
    %2 = arith.cmpi ne, %1, %c0_i32_0 : i32
    scf.if %2 {
      %cst_19 = arith.constant 0.000000e+00 : f32
      %50 = vector.broadcast %cst_19 : f32 to vector<128x1xf32>
      %c0_20 = arith.constant 0 : index
      %c0_21 = arith.constant 0 : index
      %51 = vector.load %arg5[%c0_20, %c0_21] : memref<128x1xf32, #tpu.memory_space<vmem>>, vector<128x1xf32>
      tpu.vector_store %arg5[%c0_20, %c0_21], %50 {strides = array<i32>} : memref<128x1xf32, #tpu.memory_space<vmem>>, vector<128x1xf32>,
    } else {
    }
    %c0 = arith.constant 0 : index
    %c0_1 = arith.constant 0 : index
    %3 = vector.load %arg2[%c0, %c0_1] : memref<128x32xf32, #tpu.memory_space<vmem>>, vector<128x32xf32>
    %4 = arith.mulf %3, %3 : vector<128x32xf32>
    %cst = arith.constant dense<0.000000e+00> : vector<128xf32>
    %5 = vector.multi_reduction <add>, %4, %cst [1] : vector<128x32xf32> to vector<128xf32>
    %6 = vector.shape_cast %5 : vector<128xf32> to vector<128x1xf32>
    %cst_2 = arith.constant 1.000000e-24 : f32
    %7 = vector.broadcast %cst_2 : f32 to vector<128x1xf32>
    %8 = arith.maximumf %6, %7 : vector<128x1xf32>
    %9 = math.rsqrt %8 : vector<128x1xf32>
    %10 = vector.broadcast %9 : vector<128x1xf32> to vector<128x32xf32>
    %11 = arith.mulf %3, %10 : vector<128x32xf32>
    %c0_3 = arith.constant 0 : index
    %c0_4 = arith.constant 0 : index
    %12 = vector.load %arg3[%c0_3, %c0_4] : memref<128x32xf32, #tpu.memory_space<vmem>>, vector<128x32xf32>
    %13 = arith.mulf %12, %12 : vector<128x32xf32>
    %cst_5 = arith.constant dense<0.000000e+00> : vector<128xf32>
    %14 = vector.multi_reduction <add>, %13, %cst_5 [1] : vector<128x32xf32> to vector<128xf32>
    %15 = vector.shape_cast %14 : vector<128xf32> to vector<128x1xf32>
    %cst_6 = arith.constant 1.000000e-24 : f32
    %16 = vector.broadcast %cst_6 : f32 to vector<128x1xf32>
    %17 = arith.maximumf %15, %16 : vector<128x1xf32>
    %18 = math.rsqrt %17 : vector<128x1xf32>
    %19 = vector.broadcast %18 : vector<128x1xf32> to vector<128x32xf32>
    %20 = arith.mulf %12, %19 : vector<128x32xf32>
    %21 = arith.mulf %11, %11 : vector<128x32xf32>
    %cst_7 = arith.constant dense<0.000000e+00> : vector<128xf32>
    %22 = vector.multi_reduction <add>, %21, %cst_7 [1] : vector<128x32xf32> to vector<128xf32>
    %23 = vector.shape_cast %22 : vector<128xf32> to vector<128x1xf32>
    %cst_8 = arith.constant 2.000000e+01 : f32
    %24 = vector.broadcast %cst_8 : f32 to vector<128x1xf32>
    %25 = arith.mulf %24, %23 : vector<128x1xf32>
    %cst_9 = arith.constant dense<0.000000e+00> : vector<128x128xf32>
    %26 = tpu.matmul %11, %20, %cst_9 {dimension_numbers = #tpu.dot_dimension_numbers<[1], [1], [0], [0], [0, 0, 1, 0], [], []>} : vector<128x32xf32>, vector<128x32xf32>, vector<128x128xf32> -> vector<128x128xf32>
    %cst_10 = arith.constant 2.000000e+01 : f32
    %27 = vector.broadcast %cst_10 : f32 to vector<128x128xf32>
    %28 = arith.mulf %26, %27 : vector<128x128xf32>
    %29 = vector.broadcast %25 : vector<128x1xf32> to vector<128x128xf32>
    %30 = arith.subf %28, %29 : vector<128x128xf32>
    %31 = math.exp %30 : vector<128x128xf32>
    %c128_i32 = arith.constant 128 : i32
    %32 = arith.muli %arg1, %c128_i32 : i32
    %33 = tpu.iota {dimensions = array<i32: 1>} : vector<1x128xi32>
    %34 = vector.broadcast %32 : i32 to vector<1x128xi32>
    %35 = arith.addi %34, %33 : vector<1x128xi32>
    %c8_i32 = arith.constant 8 : i32
    %36 = vector.broadcast %c8_i32 : i32 to vector<1x128xi32>
    %37 = arith.cmpi slt, %35, %36 : vector<1x128xi32>
    %cst_11 = arith.constant 0.000000e+00 : f32
    %38 = vector.shape_cast %37 : vector<1x128xi1> to vector<1x128xi1>
    %39 = vector.broadcast %38 : vector<1x128xi1> to vector<128x128xi1>
    %40 = vector.broadcast %cst_11 : f32 to vector<128x128xf32>
    %41 = arith.select %39, %31, %40 : vector<128x128xi1>, vector<128x128xf32>
    %c0_12 = arith.constant 0 : index
    %c0_13 = arith.constant 0 : index
    %42 = vector.load %arg5[%c0_12, %c0_13] : memref<128x1xf32, #tpu.memory_space<vmem>>, vector<128x1xf32>
    %cst_14 = arith.constant dense<0.000000e+00> : vector<128xf32>
    %43 = vector.multi_reduction <add>, %41, %cst_14 [1] : vector<128x128xf32> to vector<128xf32>
    %44 = vector.shape_cast %43 : vector<128xf32> to vector<128x1xf32>
    %45 = arith.addf %42, %44 : vector<128x1xf32>
    %c0_15 = arith.constant 0 : index
    %c0_16 = arith.constant 0 : index
    %46 = vector.load %arg5[%c0_15, %c0_16] : memref<128x1xf32, #tpu.memory_space<vmem>>, vector<128x1xf32>
    tpu.vector_store %arg5[%c0_15, %c0_16], %45 {strides = array<i32>} : memref<128x1xf32, #tpu.memory_space<vmem>>, vector<128x1xf32>,
    %c0_i32_17 = arith.constant 0 : i32
    %47 = arith.cmpi eq, %arg1, %c0_i32_17 : i32
    %48 = arith.extui %47 : i1 to i32
    %c0_i32_18 = arith.constant 0 : i32
    %49 = arith.cmpi ne, %48, %c0_i32_18 : i32
    scf.if %49 {
      %c0_19 = arith.constant 0 : index
      %c0_20 = arith.constant 0 : index
      %50 = vector.load %arg5[%c0_19, %c0_20] : memref<128x1xf32, #tpu.memory_space<vmem>>, vector<128x1xf32>
      %51 = math.log %50 : vector<128x1xf32>
      %c128_i32_21 = arith.constant 128 : i32
      %52 = arith.muli %arg0, %c128_i32_21 : i32
      %53 = tpu.iota {dimensions = array<i32: 0>} : vector<128x1xi32>
      %54 = vector.broadcast %52 : i32 to vector<128x1xi32>
      %55 = arith.addi %54, %53 : vector<128x1xi32>
      %c8_i32_22 = arith.constant 8 : i32
      %56 = vector.broadcast %c8_i32_22 : i32 to vector<128x1xi32>
      %57 = arith.cmpi slt, %55, %56 : vector<128x1xi32>
      %cst_23 = arith.constant 0.000000e+00 : f32
      %58 = vector.broadcast %cst_23 : f32 to vector<128x1xf32>
      %59 = arith.select %57, %51, %58 : vector<128x1xi1>, vector<128x1xf32>
      %cst_24 = arith.constant dense<0.000000e+00> : vector<1xf32>
      %60 = vector.multi_reduction <add>, %59, %cst_24 [0] : vector<128x1xf32> to vector<1xf32>
      %61 = vector.shape_cast %60 : vector<1xf32> to vector<1x1xf32>
      %62 = vector.shape_cast %61 : vector<1x1xf32> to vector<1x1xf32>
      %63 = vector.broadcast %62 : vector<1x1xf32> to vector<1x128xf32>
      %c0_25 = arith.constant 0 : index
      %c0_26 = arith.constant 0 : index
      %64 = vector.load %arg4[%c0_25, %c0_26] : memref<1x128xf32, #tpu.memory_space<vmem>>, vector<1x128xf32>
      tpu.vector_store %arg4[%c0_25, %c0_26], %63 {strides = array<i32>} : memref<1x128xf32, #tpu.memory_space<vmem>>, vector<1x128xf32>,
    } else {
    }
    return
  }
  func.func @transform_0(%arg0: i32, %arg1: i32) -> (i32, i32) {
    %c0_i32 = arith.constant 0 : i32
    %c0_i32_0 = arith.constant 0 : i32
    return %arg0, %c0_i32 : i32, i32
  }
  func.func @transform_1(%arg0: i32, %arg1: i32) -> (i32, i32) {
    %c0_i32 = arith.constant 0 : i32
    %c0_i32_0 = arith.constant 0 : i32
    return %arg1, %c0_i32 : i32, i32
  }
  func.func @transform_2(%arg0: i32, %arg1: i32) -> (i32, i32) {
    %c0_i32 = arith.constant 0 : i32
    %c0_i32_0 = arith.constant 0 : i32
    return %c0_i32, %arg0 : i32, i32
  }
}

</mosaic_0001>

<llo_original>
// kernel: tpu_custom_call.1
$region0: #{tpu_custom_call.1}
  #allocation0 [shape = 'u32[]', space=smem, size = 0x4, offset = 0x4, fixed_abs, tag = 'smem constant byte address 0x4 - core index']
  #allocation1 [shape = 'u32[144,128]{1,0:T(1,128)}', space=vmem, size = 0x12000, scoped, tag = 'internal scratch']
  #allocation2 [shape = 'f32[128,1]{1,0:T(8,128)}', space=vmem, size = 0x10000, scoped, tag = 'scratch operand']
  %s0 = inlined_call_operand.vmem [shape: f32[128,32], index: 0, kind: input, shape index: {}]
  %s1 = inlined_call_operand.vmem [shape: f32[128,32], index: 1, kind: input, shape index: {}]
  %s2 = inlined_call_operand.hbm [shape: f32[1,128], index: 2, kind: output, shape index: {}]
  %s3 = sld [smem:[#allocation0]]
  $region26: #{tpu_custom_call.1} parent=0
    _
  %s5 = ssub.s32 1, %s3
  %s6 = scalar_select 0, %s5, %s3
  $region1: #{tpu_custom_call.1} parent=0
    #allocation3 [shape = 'u8[512]{0}', space=vmem, size = 0x400, scoped, tag = 'output window, operand 0, single buffered']
    #allocation4 [shape = 's32[1]{0}', space=sflag, size = 0x4, scoped, tag = 'scoped memory for tpu_custom_call.1']
    %7 = vsyncpa [#allocation4], 0
    // Predicated region
    $region2: #{tpu_custom_call.1} parent=1 // pred_check
      _
    $region3: #{tpu_custom_call.1} parent=1 // pred_check_branch
      %9 = sbr.rel (0) target = $region5
    $region4: #{tpu_custom_call.1} parent=1 // pred_region
      _
    $region5: #{tpu_custom_call.1} parent=1 // pred_fallthru
      _
    // Predicated region
    $region6: #{tpu_custom_call.1} parent=1 // pred_check
      _
    $region7: #{tpu_custom_call.1} parent=1 // pred_check_branch
      %11 = sbr.rel (0) target = $region9
    $region8: #{tpu_custom_call.1} parent=1 // pred_region
      _
    $region9: #{tpu_custom_call.1} parent=1 // pred_fallthru
      _
    %p12 = scmp.eq.s32.totalorder 0, 0
    // Predicated region
    $region10: #{tpu_custom_call.1} parent=1 // pred_check
      %p13 = pneg %p12
    $region11: #{tpu_custom_call.1} parent=1 // pred_check_branch
      %15 = sbr.rel (%p13) target = $region13
    $region12: #{tpu_custom_call.1} parent=1 // pred_region
      %vm16 = vcmask 7168
      %17 = vst.msk [vmem:[#allocation2] sm:$0xff] %vm16, 0.0
      %18 = vst.msk [vmem:[#allocation2 + $0x8] sm:$0xff] %vm16, 0.0
      %19 = vst.msk [vmem:[#allocation2 + $0x10] sm:$0xff] %vm16, 0.0
      %20 = vst.msk [vmem:[#allocation2 + $0x18] sm:$0xff] %vm16, 0.0
      %21 = vst.msk [vmem:[#allocation2 + $0x20] sm:$0xff] %vm16, 0.0
      %22 = vst.msk [vmem:[#allocation2 + $0x28] sm:$0xff] %vm16, 0.0
      %23 = vst.msk [vmem:[#allocation2 + $0x30] sm:$0xff] %vm16, 0.0
      %24 = vst.msk [vmem:[#allocation2 + $0x38] sm:$0xff] %vm16, 0.0
      %25 = vst.msk [vmem:[#allocation2 + $0x40] sm:$0xff] %vm16, 0.0
      %26 = vst.msk [vmem:[#allocation2 + $0x48] sm:$0xff] %vm16, 0.0
      %27 = vst.msk [vmem:[#allocation2 + $0x50] sm:$0xff] %vm16, 0.0
      %28 = vst.msk [vmem:[#allocation2 + $0x58] sm:$0xff] %vm16, 0.0
      %29 = vst.msk [vmem:[#allocation2 + $0x60] sm:$0xff] %vm16, 0.0
      %30 = vst.msk [vmem:[#allocation2 + $0x68] sm:$0xff] %vm16, 0.0
      %31 = vst.msk [vmem:[#allocation2 + $0x70] sm:$0xff] %vm16, 0.0
      %32 = vst.msk [vmem:[#allocation2 + $0x78] sm:$0xff] %vm16, 0.0
    $region13: #{tpu_custom_call.1} parent=1 // pred_fallthru
      _
    %v33 = vld [vmem:[%s0] sm:$0xff]
    %v34 = vld [vmem:[%s0 + $0x8] sm:$0xff]
    %v35 = vld [vmem:[%s0 + $0x10] sm:$0xff]
    %v36 = vld [vmem:[%s0 + $0x18] sm:$0xff]
    %v37 = vld [vmem:[%s0 + $0x20] sm:$0xff]
    %v38 = vld [vmem:[%s0 + $0x28] sm:$0xff]
    %v39 = vld [vmem:[%s0 + $0x30] sm:$0xff]
    %v40 = vld [vmem:[%s0 + $0x38] sm:$0xff]
    %v41 = vld [vmem:[%s0 + $0x40] sm:$0xff]
    %v42 = vld [vmem:[%s0 + $0x48] sm:$0xff]
    %v43 = vld [vmem:[%s0 + $0x50] sm:$0xff]
    %v44 = vld [vmem:[%s0 + $0x58] sm:$0xff]
    %v45 = vld [vmem:[%s0 + $0x60] sm:$0xff]
    %v46 = vld [vmem:[%s0 + $0x68] sm:$0xff]
    %v47 = vld [vmem:[%s0 + $0x70] sm:$0xff]
    %v48 = vld [vmem:[%s0 + $0x78] sm:$0xff]
    %v49 = vmul.f32 %v33, %v33
    %v50 = vmul.f32 %v34, %v34
    %v51 = vmul.f32 %v35, %v35
    %v52 = vmul.f32 %v36, %v36
    %v53 = vmul.f32 %v37, %v37
    %v54 = vmul.f32 %v38, %v38
    %v55 = vmul.f32 %v39, %v39
    %v56 = vmul.f32 %v40, %v40
    %v57 = vmul.f32 %v41, %v41
    %v58 = vmul.f32 %v42, %v42
    %v59 = vmul.f32 %v43, %v43
    %v60 = vmul.f32 %v44, %v44
    %v61 = vmul.f32 %v45, %v45
    %v62 = vmul.f32 %v46, %v46
    %v63 = vmul.f32 %v47, %v47
    %v64 = vmul.f32 %v48, %v48
    %vm65 = vcmask 261120
    %v66 = vsel %vm65, %v49, 0.0
    %67 = vadd.xlane.f32.xlu0 %v66
    %v68 = vpop.xlane.xlu0 %67
    %v69 = vsel %vm65, %v50, 0.0
    %70 = vadd.xlane.f32.xlu0 %v69
    %v71 = vpop.xlane.xlu0 %70
    %v72 = vsel %vm65, %v51, 0.0
    %73 = vadd.xlane.f32.xlu0 %v72
    %v74 = vpop.xlane.xlu0 %73
    %v75 = vsel %vm65, %v52, 0.0
    %76 = vadd.xlane.f32.xlu0 %v75
    %v77 = vpop.xlane.xlu0 %76
    %v78 = vsel %vm65, %v53, 0.0
    %79 = vadd.xlane.f32.xlu0 %v78
    %v80 = vpop.xlane.xlu0 %79
    %v81 = vsel %vm65, %v54, 0.0
    %82 = vadd.xlane.f32.xlu0 %v81
    %v83 = vpop.xlane.xlu0 %82
    %v84 = vsel %vm65, %v55, 0.0
    %85 = vadd.xlane.f32.xlu0 %v84
    %v86 = vpop.xlane.xlu0 %85
    %v87 = vsel %vm65, %v56, 0.0
    %88 = vadd.xlane.f32.xlu0 %v87
    %v89 = vpop.xlane.xlu0 %88
    %v90 = vsel %vm65, %v57, 0.0
    %91 = vadd.xlane.f32.xlu0 %v90
    %v92 = vpop.xlane.xlu0 %91
    %v93 = vsel %vm65, %v58, 0.0
    %94 = vadd.xlane.f32.xlu0 %v93
    %v95 = vpop.xlane.xlu0 %94
    %v96 = vsel %vm65, %v59, 0.0
    %97 = vadd.xlane.f32.xlu0 %v96
    %v98 = vpop.xlane.xlu0 %97
    %v99 = vsel %vm65, %v60, 0.0
    %100 = vadd.xlane.f32.xlu0 %v99
    %v101 = vpop.xlane.xlu0 %100
    %v102 = vsel %vm65, %v61, 0.0
    %103 = vadd.xlane.f32.xlu0 %v102
    %v104 = vpop.xlane.xlu0 %103
    %v105 = vsel %vm65, %v62, 0.0
    %106 = vadd.xlane.f32.xlu0 %v105
    %v107 = vpop.xlane.xlu0 %106
    %v108 = vsel %vm65, %v63, 0.0
    %109 = vadd.xlane.f32.xlu0 %v108
    %v110 = vpop.xlane.xlu0 %109
    %v111 = vsel %vm65, %v64, 0.0
    %112 = vadd.xlane.f32.xlu0 %v111
    %v113 = vpop.xlane.xlu0 %112
    %v114 = vmax.f32 %v68, 1e-24
    %v115 = vmax.f32 %v71, 1e-24
    %v116 = vmax.f32 %v74, 1e-24
    %v117 = vmax.f32 %v77, 1e-24
    %v118 = vmax.f32 %v80, 1e-24
    %v119 = vmax.f32 %v83, 1e-24
    %v120 = vmax.f32 %v86, 1e-24
    %v121 = vmax.f32 %v89, 1e-24
    %v122 = vmax.f32 %v92, 1e-24
    %v123 = vmax.f32 %v95, 1e-24
    %v124 = vmax.f32 %v98, 1e-24
    %v125 = vmax.f32 %v101, 1e-24
    %v126 = vmax.f32 %v104, 1e-24
    %v127 = vmax.f32 %v107, 1e-24
    %v128 = vmax.f32 %v110, 1e-24
    %v129 = vmax.f32 %v113, 1e-24
    %v130 = vrsqrt.pop %v114
    %v131 = vrsqrt.pop %v115
    %v132 = vrsqrt.pop %v116
    %v133 = vrsqrt.pop %v117
    %v134 = vrsqrt.pop %v118
    %v135 = vrsqrt.pop %v119
    %v136 = vrsqrt.pop %v120
    %v137 = vrsqrt.pop %v121
    %v138 = vrsqrt.pop %v122
    %v139 = vrsqrt.pop %v123
    %v140 = vrsqrt.pop %v124
    %v141 = vrsqrt.pop %v125
    %v142 = vrsqrt.pop %v126
    %v143 = vrsqrt.pop %v127
    %v144 = vrsqrt.pop %v128
    %v145 = vrsqrt.pop %v129
    %v146 = vmul.f32 %v33, %v130
    %v147 = vmul.f32 %v34, %v131
    %v148 = vmul.f32 %v35, %v132
    %v149 = vmul.f32 %v36, %v133
    %v150 = vmul.f32 %v37, %v134
    %v151 = vmul.f32 %v38, %v135
    %v152 = vmul.f32 %v39, %v136
    %v153 = vmul.f32 %v40, %v137
    %v154 = vmul.f32 %v41, %v138
    %v155 = vmul.f32 %v42, %v139
    %v156 = vmul.f32 %v43, %v140
    %v157 = vmul.f32 %v44, %v141
    %v158 = vmul.f32 %v45, %v142
    %v159 = vmul.f32 %v46, %v143
    %v160 = vmul.f32 %v47, %v144
    %v161 = vmul.f32 %v48, %v145
    %v162 = vld [vmem:[%s1] sm:$0xff]
    %v163 = vld [vmem:[%s1 + $0x8] sm:$0xff]
    %v164 = vld [vmem:[%s1 + $0x10] sm:$0xff]
    %v165 = vld [vmem:[%s1 + $0x18] sm:$0xff]
    %v166 = vld [vmem:[%s1 + $0x20] sm:$0xff]
    %v167 = vld [vmem:[%s1 + $0x28] sm:$0xff]
    %v168 = vld [vmem:[%s1 + $0x30] sm:$0xff]
    %v169 = vld [vmem:[%s1 + $0x38] sm:$0xff]
    %v170 = vld [vmem:[%s1 + $0x40] sm:$0xff]
    %v171 = vld [vmem:[%s1 + $0x48] sm:$0xff]
    %v172 = vld [vmem:[%s1 + $0x50] sm:$0xff]
    %v173 = vld [vmem:[%s1 + $0x58] sm:$0xff]
    %v174 = vld [vmem:[%s1 + $0x60] sm:$0xff]
    %v175 = vld [vmem:[%s1 + $0x68] sm:$0xff]
    %v176 = vld [vmem:[%s1 + $0x70] sm:$0xff]
    %v177 = vld [vmem:[%s1 + $0x78] sm:$0xff]
    %v178 = vmul.f32 %v162, %v162
    %v179 = vmul.f32 %v163, %v163
    %v180 = vmul.f32 %v164, %v164
    %v181 = vmul.f32 %v165, %v165
    %v182 = vmul.f32 %v166, %v166
    %v183 = vmul.f32 %v167, %v167
    %v184 = vmul.f32 %v168, %v168
    %v185 = vmul.f32 %v169, %v169
    %v186 = vmul.f32 %v170, %v170
    %v187 = vmul.f32 %v171, %v171
    %v188 = vmul.f32 %v172, %v172
    %v189 = vmul.f32 %v173, %v173
    %v190 = vmul.f32 %v174, %v174
    %v191 = vmul.f32 %v175, %v175
    %v192 = vmul.f32 %v176, %v176
    %v193 = vmul.f32 %v177, %v177
    %v194 = vsel %vm65, %v178, 0.0
    %195 = vadd.xlane.f32.xlu0 %v194
    %v196 = vpop.xlane.xlu0 %195
    %v197 = vsel %vm65, %v179, 0.0
    %198 = vadd.xlane.f32.xlu0 %v197
    %v199 = vpop.xlane.xlu0 %198
    %v200 = vsel %vm65, %v180, 0.0
    %201 = vadd.xlane.f32.xlu0 %v200
    %v202 = vpop.xlane.xlu0 %201
    %v203 = vsel %vm65, %v181, 0.0
    %204 = vadd.xlane.f32.xlu0 %v203
    %v205 = vpop.xlane.xlu0 %204
    %v206 = vsel %vm65, %v182, 0.0
    %207 = vadd.xlane.f32.xlu0 %v206
    %v208 = vpop.xlane.xlu0 %207
    %v209 = vsel %vm65, %v183, 0.0
    %210 = vadd.xlane.f32.xlu0 %v209
    %v211 = vpop.xlane.xlu0 %210
    %v212 = vsel %vm65, %v184, 0.0
    %213 = vadd.xlane.f32.xlu0 %v212
    %v214 = vpop.xlane.xlu0 %213
    %v215 = vsel %vm65, %v185, 0.0
    %216 = vadd.xlane.f32.xlu0 %v215
    %v217 = vpop.xlane.xlu0 %216
    %v218 = vsel %vm65, %v186, 0.0
    %219 = vadd.xlane.f32.xlu0 %v218
    %v220 = vpop.xlane.xlu0 %219
    %v221 = vsel %vm65, %v187, 0.0
    %222 = vadd.xlane.f32.xlu0 %v221
    %v223 = vpop.xlane.xlu0 %222
    %v224 = vsel %vm65, %v188, 0.0
    %225 = vadd.xlane.f32.xlu0 %v224
    %v226 = vpop.xlane.xlu0 %225
    %v227 = vsel %vm65, %v189, 0.0
    %228 = vadd.xlane.f32.xlu0 %v227
    %v229 = vpop.xlane.xlu0 %228
    %v230 = vsel %vm65, %v190, 0.0
    %231 = vadd.xlane.f32.xlu0 %v230
    %v232 = vpop.xlane.xlu0 %231
    %v233 = vsel %vm65, %v191, 0.0
    %234 = vadd.xlane.f32.xlu0 %v233
    %v235 = vpop.xlane.xlu0 %234
    %v236 = vsel %vm65, %v192, 0.0
    %237 = vadd.xlane.f32.xlu0 %v236
    %v238 = vpop.xlane.xlu0 %237
    %v239 = vsel %vm65, %v193, 0.0
    %240 = vadd.xlane.f32.xlu0 %v239
    %v241 = vpop.xlane.xlu0 %240
    %v242 = vmax.f32 %v196, 1e-24
    %v243 = vmax.f32 %v199, 1e-24
    %v244 = vmax.f32 %v202, 1e-24
    %v245 = vmax.f32 %v205, 1e-24
    %v246 = vmax.f32 %v208, 1e-24
    %v247 = vmax.f32 %v211, 1e-24
    %v248 = vmax.f32 %v214, 1e-24
    %v249 = vmax.f32 %v217, 1e-24
    %v250 = vmax.f32 %v220, 1e-24
    %v251 = vmax.f32 %v223, 1e-24
    %v252 = vmax.f32 %v226, 1e-24
    %v253 = vmax.f32 %v229, 1e-24
    %v254 = vmax.f32 %v232, 1e-24
    %v255 = vmax.f32 %v235, 1e-24
    %v256 = vmax.f32 %v238, 1e-24
    %v257 = vmax.f32 %v241, 1e-24
    %v258 = vrsqrt.pop %v242
    %v259 = vrsqrt.pop %v243
    %v260 = vrsqrt.pop %v244
    %v261 = vrsqrt.pop %v245
    %v262 = vrsqrt.pop %v246
    %v263 = vrsqrt.pop %v247
    %v264 = vrsqrt.pop %v248
    %v265 = vrsqrt.pop %v249
    %v266 = vrsqrt.pop %v250
    %v267 = vrsqrt.pop %v251
    %v268 = vrsqrt.pop %v252
    %v269 = vrsqrt.pop %v253
    %v270 = vrsqrt.pop %v254
    %v271 = vrsqrt.pop %v255
    %v272 = vrsqrt.pop %v256
    %v273 = vrsqrt.pop %v257
    %v274 = vmul.f32 %v162, %v258
    %v275 = vmul.f32 %v163, %v259
    %v276 = vmul.f32 %v164, %v260
    %v277 = vmul.f32 %v165, %v261
    %v278 = vmul.f32 %v166, %v262
    %v279 = vmul.f32 %v167, %v263
    %v280 = vmul.f32 %v168, %v264
    %v281 = vmul.f32 %v169, %v265
    %v282 = vmul.f32 %v170, %v266
    %v283 = vmul.f32 %v171, %v267
    %v284 = vmul.f32 %v172, %v268
    %v285 = vmul.f32 %v173, %v269
    %v286 = vmul.f32 %v174, %v270
    %v287 = vmul.f32 %v175, %v271
    %v288 = vmul.f32 %v176, %v272
    %v289 = vmul.f32 %v177, %v273
    %v290 = vmul.f32 %v146, %v146
    %v291 = vmul.f32 %v147, %v147
    %v292 = vmul.f32 %v148, %v148
    %v293 = vmul.f32 %v149, %v149
    %v294 = vmul.f32 %v150, %v150
    %v295 = vmul.f32 %v151, %v151
    %v296 = vmul.f32 %v152, %v152
    %v297 = vmul.f32 %v153, %v153
    %v298 = vmul.f32 %v154, %v154
    %v299 = vmul.f32 %v155, %v155
    %v300 = vmul.f32 %v156, %v156
    %v301 = vmul.f32 %v157, %v157
    %v302 = vmul.f32 %v158, %v158
    %v303 = vmul.f32 %v159, %v159
    %v304 = vmul.f32 %v160, %v160
    %v305 = vmul.f32 %v161, %v161
    %v306 = vsel %vm65, %v290, 0.0
    %307 = vadd.xlane.f32.xlu0 %v306
    %v308 = vpop.xlane.xlu0 %307
    %v309 = vsel %vm65, %v291, 0.0
    %310 = vadd.xlane.f32.xlu0 %v309
    %v311 = vpop.xlane.xlu0 %310
    %v312 = vsel %vm65, %v292, 0.0
    %313 = vadd.xlane.f32.xlu0 %v312
    %v314 = vpop.xlane.xlu0 %313
    %v315 = vsel %vm65, %v293, 0.0
    %316 = vadd.xlane.f32.xlu0 %v315
    %v317 = vpop.xlane.xlu0 %316
    %v318 = vsel %vm65, %v294, 0.0
    %319 = vadd.xlane.f32.xlu0 %v318
    %v320 = vpop.xlane.xlu0 %319
    %v321 = vsel %vm65, %v295, 0.0
    %322 = vadd.xlane.f32.xlu0 %v321
    %v323 = vpop.xlane.xlu0 %322
    %v324 = vsel %vm65, %v296, 0.0
    %325 = vadd.xlane.f32.xlu0 %v324
    %v326 = vpop.xlane.xlu0 %325
    %v327 = vsel %vm65, %v297, 0.0
    %328 = vadd.xlane.f32.xlu0 %v327
    %v329 = vpop.xlane.xlu0 %328
    %v330 = vsel %vm65, %v298, 0.0
    %331 = vadd.xlane.f32.xlu0 %v330
    %v332 = vpop.xlane.xlu0 %331
    %v333 = vsel %vm65, %v299, 0.0
    %334 = vadd.xlane.f32.xlu0 %v333
    %v335 = vpop.xlane.xlu0 %334
    %v336 = vsel %vm65, %v300, 0.0
    %337 = vadd.xlane.f32.xlu0 %v336
    %v338 = vpop.xlane.xlu0 %337
    %v339 = vsel %vm65, %v301, 0.0
    %340 = vadd.xlane.f32.xlu0 %v339
    %v341 = vpop.xlane.xlu0 %340
    %v342 = vsel %vm65, %v302, 0.0
    %343 = vadd.xlane.f32.xlu0 %v342
    %v344 = vpop.xlane.xlu0 %343
    %v345 = vsel %vm65, %v303, 0.0
    %346 = vadd.xlane.f32.xlu0 %v345
    %v347 = vpop.xlane.xlu0 %346
    %v348 = vsel %vm65, %v304, 0.0
    %349 = vadd.xlane.f32.xlu0 %v348
    %v350 = vpop.xlane.xlu0 %349
    %v351 = vsel %vm65, %v305, 0.0
    %352 = vadd.xlane.f32.xlu0 %v351
    %v353 = vpop.xlane.xlu0 %352
    %v354 = vmul.f32 %v308, 20.0
    %v355 = vmul.f32 %v311, 20.0
    %v356 = vmul.f32 %v314, 20.0
    %v357 = vmul.f32 %v317, 20.0
    %v358 = vmul.f32 %v320, 20.0
    %v359 = vmul.f32 %v323, 20.0
    %v360 = vmul.f32 %v326, 20.0
    %v361 = vmul.f32 %v329, 20.0
    %v362 = vmul.f32 %v332, 20.0
    %v363 = vmul.f32 %v335, 20.0
    %v364 = vmul.f32 %v338, 20.0
    %v365 = vmul.f32 %v341, 20.0
    %v366 = vmul.f32 %v344, 20.0
    %v367 = vmul.f32 %v347, 20.0
    %v368 = vmul.f32 %v350, 20.0
    %v369 = vmul.f32 %v353, 20.0
    %v371 = vsel %vm65, %v146, 0
    %v374 = vsel %vm65, %v147, 0
    %v377 = vsel %vm65, %v148, 0
    %v380 = vsel %vm65, %v149, 0
    %v383 = vsel %vm65, %v150, 0
    %v386 = vsel %vm65, %v151, 0
    %v389 = vsel %vm65, %v152, 0
    %v392 = vsel %vm65, %v153, 0
    %v395 = vsel %vm65, %v154, 0
    %v398 = vsel %vm65, %v155, 0
    %v401 = vsel %vm65, %v156, 0
    %v404 = vsel %vm65, %v157, 0
    %v407 = vsel %vm65, %v158, 0
    %v410 = vsel %vm65, %v159, 0
    %v413 = vsel %vm65, %v160, 0
    %v416 = vsel %vm65, %v161, 0
    %v419 = vsel %vm65, %v274, 0
    %v422 = vsel %vm65, %v275, 0
    %v425 = vsel %vm65, %v276, 0
    %v428 = vsel %vm65, %v277, 0
    %v431 = vsel %vm65, %v278, 0
    %v434 = vsel %vm65, %v279, 0
    %v437 = vsel %vm65, %v280, 0
    %v440 = vsel %vm65, %v281, 0
    %v443 = vsel %vm65, %v282, 0
    %v446 = vsel %vm65, %v283, 0
    %v449 = vsel %vm65, %v284, 0
    %v452 = vsel %vm65, %v285, 0
    %v455 = vsel %vm65, %v286, 0
    %v458 = vsel %vm65, %v287, 0
    %v461 = vsel %vm65, %v288, 0
    %v464 = vsel %vm65, %v289, 0
    %466 = vmatprep.subr.mxu0 0.0
    %467 = vmatpush1.xpose.msra.mxu0 %v464
    %468 = vmatprep.subr.mxu0 0.0
    %469 = vmatpush1.xpose.msra.mxu0 %v461
    %470 = vmatprep.subr.mxu0 0.0
    %471 = vmatpush1.xpose.msra.mxu0 %v458
    %472 = vmatprep.subr.mxu0 0.0
    %473 = vmatpush1.xpose.msra.mxu0 %v455
    %474 = vmatprep.subr.mxu0 0.0
    %475 = vmatpush1.xpose.msra.mxu0 %v452
    %476 = vmatprep.subr.mxu0 0.0
    %477 = vmatpush1.xpose.msra.mxu0 %v449
    %478 = vmatprep.subr.mxu0 0.0
    %479 = vmatpush1.xpose.msra.mxu0 %v446
    %480 = vmatprep.subr.mxu0 0.0
    %481 = vmatpush1.xpose.msra.mxu0 %v443
    %482 = vmatprep.subr.mxu0 0.0
    %483 = vmatpush1.xpose.msra.mxu0 %v440
    %484 = vmatprep.subr.mxu0 0.0
    %485 = vmatpush1.xpose.msra.mxu0 %v437
    %486 = vmatprep.subr.mxu0 0.0
    %487 = vmatpush1.xpose.msra.mxu0 %v434
    %488 = vmatprep.subr.mxu0 0.0
    %489 = vmatpush1.xpose.msra.mxu0 %v431
    %490 = vmatprep.subr.mxu0 0.0
    %491 = vmatpush1.xpose.msra.mxu0 %v428
    %492 = vmatprep.subr.mxu0 0.0
    %493 = vmatpush1.xpose.msra.mxu0 %v425
    %494 = vmatprep.subr.mxu0 0.0
    %495 = vmatpush1.xpose.msra.mxu0 %v422
    %496 = vmatprep.subr.mxu0 0.0
    %497 = vmatpush1.xpose.msra.mxu0 %v419
    %498 = vmatprep.subr.mxu0 0.0
    %499 = vmatpush2.xpose.msra.mxu0 0.0
    %500 = vmatprep.subr.mxu0 0.0
    %501 = vmatpush2.xpose.msra.mxu0 0.0
    %502 = vmatprep.subr.mxu0 0.0
    %503 = vmatpush2.xpose.msra.mxu0 0.0
    %504 = vmatprep.subr.mxu0 0.0
    %505 = vmatpush2.xpose.msra.mxu0 0.0
    %506 = vmatprep.subr.mxu0 0.0
    %507 = vmatpush2.xpose.msra.mxu0 0.0
    %508 = vmatprep.subr.mxu0 0.0
    %509 = vmatpush2.xpose.msra.mxu0 0.0
    %510 = vmatprep.subr.mxu0 0.0
    %511 = vmatpush2.xpose.msra.mxu0 0.0
    %512 = vmatprep.subr.mxu0 0.0
    %513 = vmatpush2.xpose.msra.mxu0 0.0
    %514 = vmatprep.subr.mxu0 0.0
    %515 = vmatpush2.xpose.msra.mxu0 0.0
    %516 = vmatprep.subr.mxu0 0.0
    %517 = vmatpush2.xpose.msra.mxu0 0.0
    %518 = vmatprep.subr.mxu0 0.0
    %519 = vmatpush2.xpose.msra.mxu0 0.0
    %520 = vmatprep.subr.mxu0 0.0
    %521 = vmatpush2.xpose.msra.mxu0 0.0
    %522 = vmatprep.subr.mxu0 0.0
    %523 = vmatpush2.xpose.msra.mxu0 0.0
    %524 = vmatprep.subr.mxu0 0.0
    %525 = vmatpush2.xpose.msra.mxu0 0.0
    %526 = vmatprep.subr.mxu0 0.0
    %527 = vmatpush2.xpose.msra.mxu0 0.0
    %528 = vmatprep.subr.mxu0 0.0
    %529 = vmatpush2.xpose.msra.mxu0 0.0
    %530 = vmatprep.mubr.f32.mxu0 0.0
    %531 = vmatmul.mubr.f32.gmra.mxu0 %v371
    %v532 = vpop.f32.mrf.mxu0
    %v533 = vadd.f32 0.0, %v532
    %v534 = vpop.f32.mrf.mxu0
    %535 = vmatprep.mubr.f32.mxu0 0.0
    %536 = vmatmul.mubr.f32.gmra.mxu0 %v374
    %v537 = vpop.f32.mrf.mxu0
    %v538 = vadd.f32 0.0, %v537
    %v539 = vpop.f32.mrf.mxu0
    %540 = vmatprep.mubr.f32.mxu0 0.0
    %541 = vmatmul.mubr.f32.gmra.mxu0 %v377
    %v542 = vpop.f32.mrf.mxu0
    %v543 = vadd.f32 0.0, %v542
    %v544 = vpop.f32.mrf.mxu0
    %545 = vmatprep.mubr.f32.mxu0 0.0
    %546 = vmatmul.mubr.f32.gmra.mxu0 %v380
    %v547 = vpop.f32.mrf.mxu0
    %v548 = vadd.f32 0.0, %v547
    %v549 = vpop.f32.mrf.mxu0
    %550 = vmatprep.mubr.f32.mxu0 0.0
    %551 = vmatmul.mubr.f32.gmra.mxu0 %v383
    %v552 = vpop.f32.mrf.mxu0
    %v553 = vadd.f32 0.0, %v552
    %v554 = vpop.f32.mrf.mxu0
    %555 = vmatprep.mubr.f32.mxu0 0.0
    %556 = vmatmul.mubr.f32.gmra.mxu0 %v386
    %v557 = vpop.f32.mrf.mxu0
    %v558 = vadd.f32 0.0, %v557
    %v559 = vpop.f32.mrf.mxu0
    %560 = vmatprep.mubr.f32.mxu0 0.0
    %561 = vmatmul.mubr.f32.gmra.mxu0 %v389
    %v562 = vpop.f32.mrf.mxu0
    %v563 = vadd.f32 0.0, %v562
    %v564 = vpop.f32.mrf.mxu0
    %565 = vmatprep.mubr.f32.mxu0 0.0
    %566 = vmatmul.mubr.f32.gmra.mxu0 %v392
    %v567 = vpop.f32.mrf.mxu0
    %v568 = vadd.f32 0.0, %v567
    %v569 = vpop.f32.mrf.mxu0
    %570 = vmatprep.mubr.f32.mxu0 0.0
    %571 = vmatmul.mubr.f32.gmra.mxu0 %v395
    %v572 = vpop.f32.mrf.mxu0
    %v573 = vadd.f32 0.0, %v572
    %v574 = vpop.f32.mrf.mxu0
    %575 = vmatprep.mubr.f32.mxu0 0.0
    %576 = vmatmul.mubr.f32.gmra.mxu0 %v398
    %v577 = vpop.f32.mrf.mxu0
    %v578 = vadd.f32 0.0, %v577
    %v579 = vpop.f32.mrf.mxu0
    %580 = vmatprep.mubr.f32.mxu0 0.0
    %581 = vmatmul.mubr.f32.gmra.mxu0 %v401
    %v582 = vpop.f32.mrf.mxu0
    %v583 = vadd.f32 0.0, %v582
    %v584 = vpop.f32.mrf.mxu0
    %585 = vmatprep.mubr.f32.mxu0 0.0
    %586 = vmatmul.mubr.f32.gmra.mxu0 %v404
    %v587 = vpop.f32.mrf.mxu0
    %v588 = vadd.f32 0.0, %v587
    %v589 = vpop.f32.mrf.mxu0
    %590 = vmatprep.mubr.f32.mxu0 0.0
    %591 = vmatmul.mubr.f32.gmra.mxu0 %v407
    %v592 = vpop.f32.mrf.mxu0
    %v593 = vadd.f32 0.0, %v592
    %v594 = vpop.f32.mrf.mxu0
    %595 = vmatprep.mubr.f32.mxu0 0.0
    %596 = vmatmul.mubr.f32.gmra.mxu0 %v410
    %v597 = vpop.f32.mrf.mxu0
    %v598 = vadd.f32 0.0, %v597
    %v599 = vpop.f32.mrf.mxu0
    %600 = vmatprep.mubr.f32.mxu0 0.0
    %601 = vmatmul.mubr.f32.gmra.mxu0 %v413
    %v602 = vpop.f32.mrf.mxu0
    %v603 = vadd.f32 0.0, %v602
    %v604 = vpop.f32.mrf.mxu0
    %605 = vmatprep.mubr.f32.mxu0 0.0
    %606 = vmatmul.mubr.f32.gmra.mxu0 %v416
    %v607 = vpop.f32.mrf.mxu0
    %v608 = vadd.f32 0.0, %v607
    %v609 = vpop.f32.mrf.mxu0
    %610 = vdwg.mxu0
    %v611 = vmul.f32 %v533, 20.0
    %v612 = vmul.f32 %v538, 20.0
    %v613 = vmul.f32 %v543, 20.0
    %v614 = vmul.f32 %v548, 20.0
    %v615 = vmul.f32 %v553, 20.0
    %v616 = vmul.f32 %v558, 20.0
    %v617 = vmul.f32 %v563, 20.0
    %v618 = vmul.f32 %v568, 20.0
    %v619 = vmul.f32 %v573, 20.0
    %v620 = vmul.f32 %v578, 20.0
    %v621 = vmul.f32 %v583, 20.0
    %v622 = vmul.f32 %v588, 20.0
    %v623 = vmul.f32 %v593, 20.0
    %v624 = vmul.f32 %v598, 20.0
    %v625 = vmul.f32 %v603, 20.0
    %v626 = vmul.f32 %v608, 20.0
    %v627 = vsub.f32 %v611, %v354
    %v628 = vsub.f32 %v612, %v355
    %v629 = vsub.f32 %v613, %v356
    %v630 = vsub.f32 %v614, %v357
    %v631 = vsub.f32 %v615, %v358
    %v632 = vsub.f32 %v616, %v359
    %v633 = vsub.f32 %v617, %v360
    %v634 = vsub.f32 %v618, %v361
    %v635 = vsub.f32 %v619, %v362
    %v636 = vsub.f32 %v620, %v363
    %v637 = vsub.f32 %v621, %v364
    %v638 = vsub.f32 %v622, %v365
    %v639 = vsub.f32 %v623, %v366
    %v640 = vsub.f32 %v624, %v367
    %v641 = vsub.f32 %v625, %v368
    %v642 = vsub.f32 %v626, %v369
    %v643 = vmul.f32 %v627, 1.442695
    %v644 = vpow.pop %v643
    %v645 = vmul.f32 %v628, 1.442695
    %v646 = vpow.pop %v645
    %v647 = vmul.f32 %v629, 1.442695
    %v648 = vpow.pop %v647
    %v649 = vmul.f32 %v630, 1.442695
    %v650 = vpow.pop %v649
    %v651 = vmul.f32 %v631, 1.442695
    %v652 = vpow.pop %v651
    %v653 = vmul.f32 %v632, 1.442695
    %v654 = vpow.pop %v653
    %v655 = vmul.f32 %v633, 1.442695
    %v656 = vpow.pop %v655
    %v657 = vmul.f32 %v634, 1.442695
    %v658 = vpow.pop %v657
    %v659 = vmul.f32 %v635, 1.442695
    %v660 = vpow.pop %v659
    %v661 = vmul.f32 %v636, 1.442695
    %v662 = vpow.pop %v661
    %v663 = vmul.f32 %v637, 1.442695
    %v664 = vpow.pop %v663
    %v665 = vmul.f32 %v638, 1.442695
    %v666 = vpow.pop %v665
    %v667 = vmul.f32 %v639, 1.442695
    %v668 = vpow.pop %v667
    %v669 = vmul.f32 %v640, 1.442695
    %v670 = vpow.pop %v669
    %v671 = vmul.f32 %v641, 1.442695
    %v672 = vpow.pop %v671
    %v673 = vmul.f32 %v642, 1.442695
    %v674 = vpow.pop %v673
    %s675 = smul.u32 0, 128
    %v676 = vlaneseq
    %v677 = vand.u32 %v676, 127
    %v678 = vstv %s675
    %v679 = vadd.s32 %v678, %v677
    %vm680 = vcmp.lt.s32.totalorder %v679, 8
    %v681 = vsel %vm680, 1, 0
    %vm682 = vcmp.eq.s32.totalorder %v681, 1
    %v683 = vsel %vm682, %v644, 0.0
    %v684 = vsel %vm682, %v646, 0.0
    %v685 = vsel %vm682, %v648, 0.0
    %v686 = vsel %vm682, %v650, 0.0
    %v687 = vsel %vm682, %v652, 0.0
    %v688 = vsel %vm682, %v654, 0.0
    %v689 = vsel %vm682, %v656, 0.0
    %v690 = vsel %vm682, %v658, 0.0
    %v691 = vsel %vm682, %v660, 0.0
    %v692 = vsel %vm682, %v662, 0.0
    %v693 = vsel %vm682, %v664, 0.0
    %v694 = vsel %vm682, %v666, 0.0
    %v695 = vsel %vm682, %v668, 0.0
    %v696 = vsel %vm682, %v670, 0.0
    %v697 = vsel %vm682, %v672, 0.0
    %v698 = vsel %vm682, %v674, 0.0
    %v699 = vld [vmem:[#allocation2] sm:$0xff]
    %v700 = vld [vmem:[#allocation2 + $0x8] sm:$0xff]
    %v701 = vld [vmem:[#allocation2 + $0x10] sm:$0xff]
    %v702 = vld [vmem:[#allocation2 + $0x18] sm:$0xff]
    %v703 = vld [vmem:[#allocation2 + $0x20] sm:$0xff]
    %v704 = vld [vmem:[#allocation2 + $0x28] sm:$0xff]
    %v705 = vld [vmem:[#allocation2 + $0x30] sm:$0xff]
    %v706 = vld [vmem:[#allocation2 + $0x38] sm:$0xff]
    %v707 = vld [vmem:[#allocation2 + $0x40] sm:$0xff]
    %v708 = vld [vmem:[#allocation2 + $0x48] sm:$0xff]
    %v709 = vld [vmem:[#allocation2 + $0x50] sm:$0xff]
    %v710 = vld [vmem:[#allocation2 + $0x58] sm:$0xff]
    %v711 = vld [vmem:[#allocation2 + $0x60] sm:$0xff]
    %v712 = vld [vmem:[#allocation2 + $0x68] sm:$0xff]
    %v713 = vld [vmem:[#allocation2 + $0x70] sm:$0xff]
    %v714 = vld [vmem:[#allocation2 + $0x78] sm:$0xff]
    %715 = vadd.xlane.f32.xlu0 %v683
    %v716 = vpop.xlane.xlu0 %715
    %717 = vadd.xlane.f32.xlu0 %v684
    %v718 = vpop.xlane.xlu0 %717
    %719 = vadd.xlane.f32.xlu0 %v685
    %v720 = vpop.xlane.xlu0 %719
    %721 = vadd.xlane.f32.xlu0 %v686
    %v722 = vpop.xlane.xlu0 %721
    %723 = vadd.xlane.f32.xlu0 %v687
    %v724 = vpop.xlane.xlu0 %723
    %725 = vadd.xlane.f32.xlu0 %v688
    %v726 = vpop.xlane.xlu0 %725
    %727 = vadd.xlane.f32.xlu0 %v689
    %v728 = vpop.xlane.xlu0 %727
    %729 = vadd.xlane.f32.xlu0 %v690
    %v730 = vpop.xlane.xlu0 %729
    %731 = vadd.xlane.f32.xlu0 %v691
    %v732 = vpop.xlane.xlu0 %731
    %733 = vadd.xlane.f32.xlu0 %v692
    %v734 = vpop.xlane.xlu0 %733
    %735 = vadd.xlane.f32.xlu0 %v693
    %v736 = vpop.xlane.xlu0 %735
    %737 = vadd.xlane.f32.xlu0 %v694
    %v738 = vpop.xlane.xlu0 %737
    %739 = vadd.xlane.f32.xlu0 %v695
    %v740 = vpop.xlane.xlu0 %739
    %741 = vadd.xlane.f32.xlu0 %v696
    %v742 = vpop.xlane.xlu0 %741
    %743 = vadd.xlane.f32.xlu0 %v697
    %v744 = vpop.xlane.xlu0 %743
    %745 = vadd.xlane.f32.xlu0 %v698
    %v746 = vpop.xlane.xlu0 %745
    %v747 = vadd.f32 %v699, %v716
    %v748 = vadd.f32 %v700, %v718
    %v749 = vadd.f32 %v701, %v720
    %v750 = vadd.f32 %v702, %v722
    %v751 = vadd.f32 %v703, %v724
    %v752 = vadd.f32 %v704, %v726
    %v753 = vadd.f32 %v705, %v728
    %v754 = vadd.f32 %v706, %v730
    %v755 = vadd.f32 %v707, %v732
    %v756 = vadd.f32 %v708, %v734
    %v757 = vadd.f32 %v709, %v736
    %v758 = vadd.f32 %v710, %v738
    %v759 = vadd.f32 %v711, %v740
    %v760 = vadd.f32 %v712, %v742
    %v761 = vadd.f32 %v713, %v744
    %v762 = vadd.f32 %v714, %v746
    %vm763 = vcmask 7168
    %764 = vst.msk [vmem:[#allocation2] sm:$0xff] %vm763, %v747
    %765 = vst.msk [vmem:[#allocation2 + $0x8] sm:$0xff] %vm763, %v748
    %766 = vst.msk [vmem:[#allocation2 + $0x10] sm:$0xff] %vm763, %v749
    %767 = vst.msk [vmem:[#allocation2 + $0x18] sm:$0xff] %vm763, %v750
    %768 = vst.msk [vmem:[#allocation2 + $0x20] sm:$0xff] %vm763, %v751
    %769 = vst.msk [vmem:[#allocation2 + $0x28] sm:$0xff] %vm763, %v752
    %770 = vst.msk [vmem:[#allocation2 + $0x30] sm:$0xff] %vm763, %v753
    %771 = vst.msk [vmem:[#allocation2 + $0x38] sm:$0xff] %vm763, %v754
    %772 = vst.msk [vmem:[#allocation2 + $0x40] sm:$0xff] %vm763, %v755
    %773 = vst.msk [vmem:[#allocation2 + $0x48] sm:$0xff] %vm763, %v756
    %774 = vst.msk [vmem:[#allocation2 + $0x50] sm:$0xff] %vm763, %v757
    %775 = vst.msk [vmem:[#allocation2 + $0x58] sm:$0xff] %vm763, %v758
    %776 = vst.msk [vmem:[#allocation2 + $0x60] sm:$0xff] %vm763, %v759
    %777 = vst.msk [vmem:[#allocation2 + $0x68] sm:$0xff] %vm763, %v760
    %778 = vst.msk [vmem:[#allocation2 + $0x70] sm:$0xff] %vm763, %v761
    %779 = vst.msk [vmem:[#allocation2 + $0x78] sm:$0xff] %vm763, %v762
    // Predicated region
    $region14: #{tpu_custom_call.1} parent=1 // pred_check
      %p780 = pneg %p12
    $region15: #{tpu_custom_call.1} parent=1 // pred_check_branch
      %782 = sbr.rel (%p780) target = $region17
    $region16: #{tpu_custom_call.1} parent=1 // pred_region
      %v783 = vld [vmem:[#allocation2] sm:$0xff]
      %v784 = vld [vmem:[#allocation2 + $0x8] sm:$0xff]
      %v785 = vld [vmem:[#allocation2 + $0x10] sm:$0xff]
      %v786 = vld [vmem:[#allocation2 + $0x18] sm:$0xff]
      %v787 = vld [vmem:[#allocation2 + $0x20] sm:$0xff]
      %v788 = vld [vmem:[#allocation2 + $0x28] sm:$0xff]
      %v789 = vld [vmem:[#allocation2 + $0x30] sm:$0xff]
      %v790 = vld [vmem:[#allocation2 + $0x38] sm:$0xff]
      %v791 = vld [vmem:[#allocation2 + $0x40] sm:$0xff]
      %v792 = vld [vmem:[#allocation2 + $0x48] sm:$0xff]
      %v793 = vld [vmem:[#allocation2 + $0x50] sm:$0xff]
      %v794 = vld [vmem:[#allocation2 + $0x58] sm:$0xff]
      %v795 = vld [vmem:[#allocation2 + $0x60] sm:$0xff]
      %v796 = vld [vmem:[#allocation2 + $0x68] sm:$0xff]
      %v797 = vld [vmem:[#allocation2 + $0x70] sm:$0xff]
      %v798 = vld [vmem:[#allocation2 + $0x78] sm:$0xff]
      %v799 = vlog2.pop %v783
      %v800 = vmul.f32 %v799, 0.6931472
      %v801 = vlog2.pop %v784
      %v802 = vmul.f32 %v801, 0.6931472
      %v803 = vlog2.pop %v785
      %v804 = vmul.f32 %v803, 0.6931472
      %v805 = vlog2.pop %v786
      %v806 = vmul.f32 %v805, 0.6931472
      %v807 = vlog2.pop %v787
      %v808 = vmul.f32 %v807, 0.6931472
      %v809 = vlog2.pop %v788
      %v810 = vmul.f32 %v809, 0.6931472
      %v811 = vlog2.pop %v789
      %v812 = vmul.f32 %v811, 0.6931472
      %v813 = vlog2.pop %v790
      %v814 = vmul.f32 %v813, 0.6931472
      %v815 = vlog2.pop %v791
      %v816 = vmul.f32 %v815, 0.6931472
      %v817 = vlog2.pop %v792
      %v818 = vmul.f32 %v817, 0.6931472
      %v819 = vlog2.pop %v793
      %v820 = vmul.f32 %v819, 0.6931472
      %v821 = vlog2.pop %v794
      %v822 = vmul.f32 %v821, 0.6931472
      %v823 = vlog2.pop %v795
      %v824 = vmul.f32 %v823, 0.6931472
      %v825 = vlog2.pop %v796
      %v826 = vmul.f32 %v825, 0.6931472
      %v827 = vlog2.pop %v797
      %v828 = vmul.f32 %v827, 0.6931472
      %v829 = vlog2.pop %v798
      %v830 = vmul.f32 %v829, 0.6931472
      %s831 = smul.u32 0, 128
      %v832 = vlaneseq
      %v833 = vshrl.u32 %v832, 7
      %v834 = vadd.s32 %v833, 8
      %v835 = vadd.s32 %v833, 16
      %v836 = vadd.s32 %v833, 24
      %v837 = vadd.s32 %v833, 32
      %v838 = vadd.s32 %v833, 40
      %v839 = vadd.s32 %v833, 48
      %v840 = vadd.s32 %v833, 56
      %v841 = vadd.s32 %v833, 64
      %v842 = vadd.s32 %v833, 72
      %v843 = vadd.s32 %v833, 80
      %v844 = vadd.s32 %v833, 88
      %v845 = vadd.s32 %v833, 96
      %v846 = vadd.s32 %v833, 104
      %v847 = vadd.s32 %v833, 112
      %v848 = vadd.s32 %v833, 120
      %v849 = vstv %s831
      %v850 = vadd.s32 %v849, %v833
      %v851 = vadd.s32 %v849, %v834
      %v852 = vadd.s32 %v849, %v835
      %v853 = vadd.s32 %v849, %v836
      %v854 = vadd.s32 %v849, %v837
      %v855 = vadd.s32 %v849, %v838
      %v856 = vadd.s32 %v849, %v839
      %v857 = vadd.s32 %v849, %v840
      %v858 = vadd.s32 %v849, %v841
      %v859 = vadd.s32 %v849, %v842
      %v860 = vadd.s32 %v849, %v843
      %v861 = vadd.s32 %v849, %v844
      %v862 = vadd.s32 %v849, %v845
      %v863 = vadd.s32 %v849, %v846
      %v864 = vadd.s32 %v849, %v847
      %v865 = vadd.s32 %v849, %v848
      %vm866 = vcmp.lt.s32.totalorder %v850, 8
      %vm867 = vcmp.lt.s32.totalorder %v851, 8
      %vm868 = vcmp.lt.s32.totalorder %v852, 8
      %vm869 = vcmp.lt.s32.totalorder %v853, 8
      %vm870 = vcmp.lt.s32.totalorder %v854, 8
      %vm871 = vcmp.lt.s32.totalorder %v855, 8
      %vm872 = vcmp.lt.s32.totalorder %v856, 8
      %vm873 = vcmp.lt.s32.totalorder %v857, 8
      %vm874 = vcmp.lt.s32.totalorder %v858, 8
      %vm875 = vcmp.lt.s32.totalorder %v859, 8
      %vm876 = vcmp.lt.s32.totalorder %v860, 8
      %vm877 = vcmp.lt.s32.totalorder %v861, 8
      %vm878 = vcmp.lt.s32.totalorder %v862, 8
      %vm879 = vcmp.lt.s32.totalorder %v863, 8
      %vm880 = vcmp.lt.s32.totalorder %v864, 8
      %vm881 = vcmp.lt.s32.totalorder %v865, 8
      %v882 = vsel %vm866, %v800, 0.0
      %v883 = vsel %vm867, %v802, 0.0
      %v884 = vsel %vm868, %v804, 0.0
      %v885 = vsel %vm869, %v806, 0.0
      %v886 = vsel %vm870, %v808, 0.0
      %v887 = vsel %vm871, %v810, 0.0
      %v888 = vsel %vm872, %v812, 0.0
      %v889 = vsel %vm873, %v814, 0.0
      %v890 = vsel %vm874, %v816, 0.0
      %v891 = vsel %vm875, %v818, 0.0
      %v892 = vsel %vm876, %v820, 0.0
      %v893 = vsel %vm877, %v822, 0.0
      %v894 = vsel %vm878, %v824, 0.0
      %v895 = vsel %vm879, %v826, 0.0
      %v896 = vsel %vm880, %v828, 0.0
      %v897 = vsel %vm881, %v830, 0.0
      %v898 = vsel %vm763, %v882, 0.0
      %v899 = vsel %vm763, %v883, 0.0
      %v900 = vadd.f32 %v898, %v899
      %v901 = vsel %vm763, %v884, 0.0
      %v902 = vadd.f32 %v900, %v901
      %v903 = vsel %vm763, %v885, 0.0
      %v904 = vadd.f32 %v902, %v903
      %v905 = vsel %vm763, %v886, 0.0
      %v906 = vadd.f32 %v904, %v905
      %v907 = vsel %vm763, %v887, 0.0
      %v908 = vadd.f32 %v906, %v907
      %v909 = vsel %vm763, %v888, 0.0
      %v910 = vadd.f32 %v908, %v909
      %v911 = vsel %vm763, %v889, 0.0
      %v912 = vadd.f32 %v910, %v911
      %v913 = vsel %vm763, %v890, 0.0
      %v914 = vadd.f32 %v912, %v913
      %v915 = vsel %vm763, %v891, 0.0
      %v916 = vadd.f32 %v914, %v915
      %v917 = vsel %vm763, %v892, 0.0
      %v918 = vadd.f32 %v916, %v917
      %v919 = vsel %vm763, %v893, 0.0
      %v920 = vadd.f32 %v918, %v919
      %v921 = vsel %vm763, %v894, 0.0
      %v922 = vadd.f32 %v920, %v921
      %v923 = vsel %vm763, %v895, 0.0
      %v924 = vadd.f32 %v922, %v923
      %v925 = vsel %vm763, %v896, 0.0
      %v926 = vadd.f32 %v924, %v925
      %v927 = vsel %vm763, %v897, 0.0
      %v928 = vadd.f32 %v926, %v927
      %v929 = vrot.slane %v928, 4
      %v930 = vadd.f32 %v928, %v929
      %v931 = vrot.slane %v930, 2
      %v932 = vadd.f32 %v930, %v931
      %v933 = vrot.slane %v932, 1
      %v934 = vadd.f32 %v932, %v933
      %936 = vset.pattern.permute.xlu0 0
      %937 = vperm.xlu0 %936, %v934
      %v938 = vpop.permute.xlu0 %937
      %940 = vst [vmem:[#allocation3] sm:$0x1] %v938
    $region17: #{tpu_custom_call.1} parent=1 // pred_fallthru
      _
    // Predicated region
    $region18: #{tpu_custom_call.1} parent=1 // pred_check
      _
    $region19: #{tpu_custom_call.1} parent=1 // pred_check_branch
      %942 = sbr.rel (0) target = $region21
    $region20: #{tpu_custom_call.1} parent=1 // pred_region
      %s944 = ssub.s32 16, 16
      %945 = vsyncadd [#allocation4], %s944
      %s947 = sshll.u32 [#allocation3], 4
      %s948 = int_to_ptr.vmem [resolvable:$true] %s947
      %950 = dma.vmem_to_hbm [thread:$0]  %s948, 16, %s2, [#allocation4]
    $region21: #{tpu_custom_call.1} parent=1 // pred_fallthru
      _
    // Predicated region
    $region22: #{tpu_custom_call.1} parent=1 // pred_check
      _
    $region23: #{tpu_custom_call.1} parent=1 // pred_check_branch
      %952 = sbr.rel (0) target = $region25
    $region24: #{tpu_custom_call.1} parent=1 // pred_region
      %953 = dma.done [#allocation4], 16
    $region25: #{tpu_custom_call.1} parent=1 // pred_fallthru
      _
    %954 = vsyncpa [#allocation4], 1

</llo_original>
